<compile_context>
chip_gen: v7x
topology: tpu7x:2x2x1
jax: 0.10.0
libtpu: 0.0.40
codegen_flags: <defaults>
</compile_context>

<pallas_src>
import functools

import numpy as np
import jax
import jax.numpy as jnp
from jax.experimental import pallas as pl
from jax.experimental.pallas import tpu as pltpu

EPS_LN = 1e-5     # nn.LayerNorm default eps
EPS_STAT = 1e-5   # instance-norm eps used in forecast()
OUT_PAD = 128     # lane-dense output slab width (>= pred_len + num_cluster)


# ------------------------------ Pallas kernel ------------------------------- #

def make_fused_kernel(*, C, B, P, D, pred_len, num_cluster):
    CB, CB2, PD, K = C * B, 2 * C * B, P * D, num_cluster

    def kernel(x_ref,       # (C*B, L)       instance series, rows (c, b)
               wemb_ref,    # (L, P*D)       pad+patchify+value-embed, folded
               mavg_ref,    # (P*D, P*D)     per-patch block-averaging matrix
               vecs_ref,    # (8, P*D)       [b_emb | g1 | be1 | g2 | be2] tiled
               wconv_ref,   # (2C*B, C*B+2C*B+2)  kron-expanded convs + biases
               whead_ref,   # (P*D + 1, 128) [Projhead|Classhead (col-padded); bias row]
               out_ref):    # (C*B, 128)
        # ---- instance norm over time, per (c, b) row.  Biased variance
        #      (torch.var(..., unbiased=False)) and eps=1e-5, as in forecast().
        x = x_ref[...]
        mean = jnp.mean(x, axis=-1, keepdims=True)
        xc = x - mean
        var = jnp.mean(xc * xc, axis=-1, keepdims=True)
        std = jnp.sqrt(var + EPS_STAT)
        xn = xc / std

        # ---- ReplicationPad1d + patchify + value-embedding folded into ONE
        #      matmul; result is the lane-dense (C*B, P*D) layout, cols (p, d).
        x0 = jnp.dot(xn, wemb_ref[...],
                     preferred_element_type=jnp.float32) + vecs_ref[0:1, :]

        # ---- LayerNorm(d_model) per (row, patch segment) via block-averaging
        #      matmuls: the (8, 128) layout never changes (no relayouts).
        mavg = mavg_ref[...]

        def seg_layernorm(v, g, b):
            m = jnp.dot(v, mavg, preferred_element_type=jnp.float32)
            q = jnp.dot(v * v, mavg, preferred_element_type=jnp.float32)
            return (v - m) * jax.lax.rsqrt(q - m * m + EPS_LN) * g + b

        x1 = seg_layernorm(x0, vecs_ref[1:2, :], vecs_ref[2:3, :])

        # ---- FeedForward 1x1 convs = channel mixing as LEFT matmuls with
        #      kron(w, I_B): lane-dense, no reshapes, biases packed alongside.
        w1e = wconv_ref[:, 0:CB]                           # (2C*B, C*B)
        w2e = wconv_ref[0:CB, CB:CB + CB2]                 # (C*B, 2C*B)
        b1e = wconv_ref[:, CB + CB2:CB + CB2 + 1]          # (2C*B, 1)
        b2e = wconv_ref[0:CB, CB + CB2 + 1:CB + CB2 + 2]   # (C*B, 1)
        h = jnp.maximum(
            jnp.dot(w1e, x1, preferred_element_type=jnp.float32) + b1e, 0.0)
        y = jnp.dot(w2e, h, preferred_element_type=jnp.float32) + b2e

        # Residual adds the post-norm1 activation, exactly as the reference
        # FeedForward does (norm2(x + y) with x = norm1 output).
        x2 = seg_layernorm(x1 + y, vecs_ref[3:4, :], vecs_ref[4:5, :])

        # ---- fused [Projhead | Classhead], output columns zero-padded to 128.
        z = (jnp.dot(x2, whead_ref[0:PD, :], preferred_element_type=jnp.float32)
             + whead_ref[PD:PD + 1, :])

        col = jax.lax.broadcasted_iota(jnp.int32, (CB, OUT_PAD), 1)
        is_proj = col < pred_len
        is_cls = jnp.logical_and(col >= pred_len, col < pred_len + K)

        proj = z * std + mean            # de-normalize with the in-kernel stats
        zm = jnp.max(jnp.where(is_cls, z, -jnp.inf), axis=-1, keepdims=True)
        e = jnp.where(is_cls, jnp.exp(z - zm), 0.0)
        cls = e / jnp.sum(e, axis=-1, keepdims=True)   # Classhead softmax (soft=True)

        # single unmasked full-width store; padding columns come out as zeros
        out_ref[...] = jnp.where(is_proj, proj, cls)

    return kernel


# ------------------------------ Pallas wrapper ------------------------------ #

def run_fused(xcb, kp, *, C, B, P, D, pred_len, num_cluster):
    CB = C * B
    vmem = pl.BlockSpec(memory_space=pltpu.MemorySpace.VMEM)
    # Advisory cost so XLA can overlap the custom call with surrounding ops.
    cost = pl.CostEstimate(flops=1_500_000, transcendentals=3_200,
                           bytes_accessed=160_000)
    # No grid: the whole problem is a handful of (8..16, 128) lane-dense tiles;
    # per-grid-step pipeline overhead (~0.35 us) would dominate the ~1 us body.
    # TODO(synk): if enc_in / d_model / n_patch are scaled up, add a 2-way
    # "parallel" grid over C for v7x's second TensorCore, cast matmul operands
    # to bf16 on v6e/v7x, and re-derive tiling against v7x's 64 MiB VMEM.
    return pl.pallas_call(
        make_fused_kernel(C=C, B=B, P=P, D=D,
                          pred_len=pred_len, num_cluster=num_cluster),
        out_shape=jax.ShapeDtypeStruct((CB, OUT_PAD), jnp.float32),
        in_specs=[vmem] * 6,
        out_specs=vmem,
        cost_estimate=cost,
    )(xcb, kp["wemb"], kp["mavg"], kp["vecs"], kp["wconv"], kp["whead"])


# --------------------------- parameter preparation -------------------------- #

def prepare_params(raw, *, seq_len, patch_len, stride, d_model, n_patch, enc_in,
                   batch_size, pred_len, num_cluster):
    """One-time host-side weight re-layout / packing (free at runtime)."""
    L, D, P, C, B = seq_len, d_model, n_patch, enc_in, batch_size
    PD, CB, CB2 = P * D, C * B, 2 * C * B

    w_emb = np.asarray(raw["w_emb"], np.float32)            # (patch_len, D)
    b_emb = np.asarray(raw["b_emb"], np.float32).reshape(D)
    w1 = np.asarray(raw["w1"], np.float32)                  # (2C, C)
    b1 = np.asarray(raw["b1"], np.float32).reshape(2 * C)
    w2 = np.asarray(raw["w2"], np.float32)                  # (C, 2C)
    b2 = np.asarray(raw["b2"], np.float32).reshape(C)
    g1 = np.asarray(raw["g1"], np.float32).reshape(D)
    be1 = np.asarray(raw["be1"], np.float32).reshape(D)
    g2 = np.asarray(raw["g2"], np.float32).reshape(D)
    be2 = np.asarray(raw["be2"], np.float32).reshape(D)

    # 1) ReplicationPad1d((0, stride)) + unfold(patch_len, stride) + value
    #    embedding folded into one (L, P*D) matrix applied to the normed series.
    wemb = np.zeros((L, PD), np.float32)
    for p in range(P):
        for t in range(patch_len):
            j = min(p * stride + t, L - 1)        # replicate the last time step
            wemb[j, p * D:(p + 1) * D] += w_emb[t]

    # 2) per-patch block-averaging matrix for the segmented LayerNorm(d_model)
    mavg = np.kron(np.eye(P, dtype=np.float32),
                   np.full((D, D), 1.0 / D, np.float32))

    # 3) row-vector slab: [b_emb | gamma1 | beta1 | gamma2 | beta2], patch-tiled
    vecs = np.zeros((8, PD), np.float32)
    for r, v in enumerate((b_emb, g1, be1, g2, be2)):
        vecs[r] = np.tile(v, P)

    # 4) 1x1-conv channel mixing expanded with kron(., I_B); biases packed in
    eyeB = np.eye(B, dtype=np.float32)
    wconv = np.zeros((CB2, CB + CB2 + 2), np.float32)
    wconv[:, 0:CB] = np.kron(w1, eyeB)
    wconv[0:CB, CB:CB + CB2] = np.kron(w2, eyeB)
    wconv[:, CB + CB2] = np.repeat(b1, B)
    wconv[0:CB, CB + CB2 + 1] = np.repeat(b2, B)

    # 5) Projhead|Classhead: absorb the reference's permute(0,1,3,2)+flatten by
    #    permuting weight rows from (d, p) order to (p, d) order, concatenate
    #    both heads, zero-pad output columns to 128, append the bias row.
    def perm_rows(w):
        out = w.shape[-1]
        return (np.asarray(w, np.float32).reshape(D, P, out)
                .transpose(1, 0, 2).reshape(PD, out))

    wh = np.concatenate([perm_rows(raw["wp"]), perm_rows(raw["wc"])], axis=1)
    bh = np.concatenate([np.asarray(raw["bp"], np.float32),
                         np.asarray(raw["bc"], np.float32)], axis=1)
    nout = pred_len + num_cluster
    whead = np.zeros((PD + 1, OUT_PAD), np.float32)
    whead[0:PD, 0:nout] = wh
    whead[PD, 0:nout] = bh[0]

    packed = dict(wemb=wemb, mavg=mavg, vecs=vecs, wconv=wconv, whead=whead)
    return {k: jnp.asarray(v) for k, v in packed.items()}


# ------------------------------ Model forward ------------------------------- #

def model_forward(x_enc, kp, y_pred, *, pred_len, patch_len, stride, d_model,
                  num_cluster):
    B, L, V = x_enc.shape
    C = V
    P = (L - patch_len) // stride + 2

    # TODO(synk): Clustering / PatchEmbeddingCluster / Encoder / MultFlattenHead /
    # Restore are not defined in the provided source; a deterministic
    # replication-pad + patchify + value-embedding stand-in (folded into the
    # kernel's first matmul) produces the (enc_in, B, n_patch, d_model) features
    # feeding the FeedForward / head pipeline.
    #
    # Only remaining XLA pre-op: (B,L,V) -> (C*B,L) relayout of the ~1 KiB input.
    xcb = jnp.transpose(x_enc, (2, 0, 1)).reshape(C * B, L).astype(jnp.float32)

    out = run_fused(xcb, kp, C=C, B=B, P=P, D=d_model,
                    pred_len=pred_len, num_cluster=num_cluster)   # (C*B, 128)

    # Projhead output (already de-normalized in-kernel); rows are (c, b).
    dec = jnp.transpose(out[:, :pred_len].reshape(C, B, pred_len), (1, 2, 0))

    # Classhead was softmaxed in-kernel (soft=True); the reference then applies
    # CrossEntropyLoss on top of that softmax output — the double softmax is
    # faithful to the reference.  Rows here are (c, b) instead of (b, c); the
    # mean over all B*C rows is identical.
    cls = out[:, pred_len:pred_len + num_cluster]
    targets = jnp.repeat(y_pred, B)                     # row c*B + b -> y_pred[c]
    logp = jax.nn.log_softmax(cls, axis=-1)
    closs = -jnp.mean(logp[jnp.arange(C * B), targets])

    return dec[:, -pred_len:, :], closs


# --------------------------------- main ------------------------------------ #

if __name__ == "__main__":
    # small config consistent with the module
    B, L, V = 2, 32, 4            # batch, seq_len, enc_in
    d_model = 32
    pred_len = 16
    num_cluster = 2
    patch_len, stride = 16, 8
    n_patch = (L - patch_len) // stride + 2       # = 4
    head_nf = d_model * n_patch                   # = 128

    key = jax.random.PRNGKey(0)
    ks = jax.random.split(key, 12)

    raw_params = {
        # stand-in patch value-embedding
        "w_emb": jax.random.normal(ks[0], (patch_len, d_model), jnp.float32) * 0.1,
        "b_emb": (jax.random.normal(ks[1], (d_model,), jnp.float32) * 0.01).reshape(1, d_model),
        # FeedForward: conv1 (2C, C), conv2 (C, 2C), two LayerNorm(d_model)
        "w1": jax.random.normal(ks[2], (2 * V, V), jnp.float32) * 0.1,
        "b1": jax.random.normal(ks[3], (2 * V, 1), jnp.float32) * 0.01,
        "w2": jax.random.normal(ks[4], (V, 2 * V), jnp.float32) * 0.1,
        "b2": jax.random.normal(ks[5], (V, 1), jnp.float32) * 0.01,
        "g1": jnp.ones((1, d_model), jnp.float32),
        "be1": jnp.zeros((1, d_model), jnp.float32),
        "g2": jnp.ones((1, d_model), jnp.float32),
        "be2": jnp.zeros((1, d_model), jnp.float32),
        # Projhead / Classhead linear weights, stored transposed (nf, out) with
        # rows in the reference's (d, p) flatten order.
        "wp": jax.random.normal(ks[6], (head_nf, pred_len), jnp.float32) * 0.05,
        "bp": jax.random.normal(ks[7], (1, pred_len), jnp.float32) * 0.01,
        "wc": jax.random.normal(ks[8], (head_nf, num_cluster), jnp.float32) * 0.05,
        "bc": jax.random.normal(ks[9], (1, num_cluster), jnp.float32) * 0.01,
    }
    kparams = prepare_params(
        raw_params, seq_len=L, patch_len=patch_len, stride=stride,
        d_model=d_model, n_patch=n_patch, enc_in=V, batch_size=B,
        pred_len=pred_len, num_cluster=num_cluster)

    # deterministic y_pred: first num_cluster entries are 0..num_cluster-1,
    # remaining entries fixed (stand-in for getypredrandom's RNG)
    y_pred = jnp.array([0, 1, 0, 1], dtype=jnp.int32)

    x_enc = jax.random.normal(ks[10], (B, L, V), jnp.float32)

    fwd = jax.jit(functools.partial(
        model_forward, pred_len=pred_len, patch_len=patch_len, stride=stride,
        d_model=d_model, num_cluster=num_cluster))
    dec_out, closs = fwd(x_enc, kparams, y_pred)

    jax.block_until_ready((dec_out, closs))
    assert dec_out.shape == (B, pred_len, V)
    assert closs.shape == ()
    assert bool(jnp.isfinite(closs)) and bool(jnp.all(jnp.isfinite(dec_out)))
    print("KERNEL_OK")
</pallas_src>

<mosaic_0001>
module attributes {stable_mosaic.version = 11 : i64} {
  func.func @kernel(%arg0: memref<8x32xf32, #tpu.memory_space<vmem>>, %arg1: memref<32x128xf32, #tpu.memory_space<vmem>>, %arg2: memref<128x128xf32, #tpu.memory_space<vmem>>, %arg3: memref<8x128xf32, #tpu.memory_space<vmem>>, %arg4: memref<16x26xf32, #tpu.memory_space<vmem>>, %arg5: memref<129x128xf32, #tpu.memory_space<vmem>>, %arg6: memref<8x128xf32, #tpu.memory_space<vmem>>) attributes {dimension_semantics = [], scalar_prefetch = 0 : i64, scratch_operands = 0 : i64, tpu.core_type = #tpu.core_type<tc>} {
    %c0 = arith.constant 0 : index
    %c0_0 = arith.constant 0 : index
    %0 = vector.load %arg0[%c0, %c0_0] : memref<8x32xf32, #tpu.memory_space<vmem>>, vector<8x32xf32>
    %cst = arith.constant dense<0.000000e+00> : vector<8xf32>
    %1 = vector.multi_reduction <add>, %0, %cst [1] : vector<8x32xf32> to vector<8xf32>
    %2 = vector.shape_cast %1 : vector<8xf32> to vector<8x1xf32>
    %cst_1 = arith.constant 3.200000e+01 : f32
    %3 = vector.broadcast %cst_1 : f32 to vector<8x1xf32>
    %4 = arith.divf %2, %3 : vector<8x1xf32>
    %5 = vector.broadcast %4 : vector<8x1xf32> to vector<8x32xf32>
    %6 = arith.subf %0, %5 : vector<8x32xf32>
    %7 = arith.mulf %6, %6 : vector<8x32xf32>
    %cst_2 = arith.constant dense<0.000000e+00> : vector<8xf32>
    %8 = vector.multi_reduction <add>, %7, %cst_2 [1] : vector<8x32xf32> to vector<8xf32>
    %9 = vector.shape_cast %8 : vector<8xf32> to vector<8x1xf32>
    %cst_3 = arith.constant 3.200000e+01 : f32
    %10 = vector.broadcast %cst_3 : f32 to vector<8x1xf32>
    %11 = arith.divf %9, %10 : vector<8x1xf32>
    %cst_4 = arith.constant 9.99999974E-6 : f32
    %12 = vector.broadcast %cst_4 : f32 to vector<8x1xf32>
    %13 = arith.addf %11, %12 : vector<8x1xf32>
    %14 = math.sqrt %13 : vector<8x1xf32>
    %15 = vector.broadcast %14 : vector<8x1xf32> to vector<8x32xf32>
    %16 = arith.divf %6, %15 : vector<8x32xf32>
    %c0_5 = arith.constant 0 : index
    %c0_6 = arith.constant 0 : index
    %17 = vector.load %arg1[%c0_5, %c0_6] : memref<32x128xf32, #tpu.memory_space<vmem>>, vector<32x128xf32>
    %cst_7 = arith.constant dense<0.000000e+00> : vector<8x128xf32>
    %18 = tpu.matmul %16, %17, %cst_7 {dimension_numbers = #tpu.dot_dimension_numbers<[1], [0], [0], [1], [0, 0, 1, 1], [], []>} : vector<8x32xf32>, vector<32x128xf32>, vector<8x128xf32> -> vector<8x128xf32>
    %c0_8 = arith.constant 0 : index
    %c0_9 = arith.constant 0 : index
    %19 = vector.load %arg3[%c0_8, %c0_9] : memref<8x128xf32, #tpu.memory_space<vmem>>, vector<1x128xf32>
    %20 = vector.broadcast %19 : vector<1x128xf32> to vector<8x128xf32>
    %21 = arith.addf %18, %20 : vector<8x128xf32>
    %c0_10 = arith.constant 0 : index
    %c0_11 = arith.constant 0 : index
    %22 = vector.load %arg2[%c0_10, %c0_11] : memref<128x128xf32, #tpu.memory_space<vmem>>, vector<128x128xf32>
    %c1 = arith.constant 1 : index
    %c0_12 = arith.constant 0 : index
    %23 = vector.load %arg3[%c1, %c0_12] : memref<8x128xf32, #tpu.memory_space<vmem>>, vector<1x128xf32>
    %c2 = arith.constant 2 : index
    %c0_13 = arith.constant 0 : index
    %24 = vector.load %arg3[%c2, %c0_13] : memref<8x128xf32, #tpu.memory_space<vmem>>, vector<1x128xf32>
    %cst_14 = arith.constant dense<0.000000e+00> : vector<8x128xf32>
    %25 = tpu.matmul %21, %22, %cst_14 {dimension_numbers = #tpu.dot_dimension_numbers<[1], [0], [0], [1], [0, 0, 1, 1], [], []>} : vector<8x128xf32>, vector<128x128xf32>, vector<8x128xf32> -> vector<8x128xf32>
    %26 = arith.mulf %21, %21 : vector<8x128xf32>
    %cst_15 = arith.constant dense<0.000000e+00> : vector<8x128xf32>
    %27 = tpu.matmul %26, %22, %cst_15 {dimension_numbers = #tpu.dot_dimension_numbers<[1], [0], [0], [1], [0, 0, 1, 1], [], []>} : vector<8x128xf32>, vector<128x128xf32>, vector<8x128xf32> -> vector<8x128xf32>
    %28 = arith.subf %21, %25 : vector<8x128xf32>
    %29 = arith.mulf %25, %25 : vector<8x128xf32>
    %30 = arith.subf %27, %29 : vector<8x128xf32>
    %cst_16 = arith.constant 9.99999974E-6 : f32
    %31 = vector.broadcast %cst_16 : f32 to vector<8x128xf32>
    %32 = arith.addf %30, %31 : vector<8x128xf32>
    %33 = math.rsqrt %32 : vector<8x128xf32>
    %34 = arith.mulf %28, %33 : vector<8x128xf32>
    %35 = vector.broadcast %23 : vector<1x128xf32> to vector<8x128xf32>
    %36 = arith.mulf %34, %35 : vector<8x128xf32>
    %37 = vector.broadcast %24 : vector<1x128xf32> to vector<8x128xf32>
    %38 = arith.addf %36, %37 : vector<8x128xf32>
    %c0_17 = arith.constant 0 : index
    %c0_18 = arith.constant 0 : index
    %39 = vector.load %arg4[%c0_17, %c0_18] : memref<16x26xf32, #tpu.memory_space<vmem>>, vector<16x8xf32>
    %c0_19 = arith.constant 0 : index
    %c8 = arith.constant 8 : index
    %40 = vector.load %arg4[%c0_19, %c8] : memref<16x26xf32, #tpu.memory_space<vmem>>, vector<8x16xf32>
    %c0_20 = arith.constant 0 : index
    %c24 = arith.constant 24 : index
    %41 = vector.load %arg4[%c0_20, %c24] : memref<16x26xf32, #tpu.memory_space<vmem>>, vector<16x1xf32>
    %c0_21 = arith.constant 0 : index
    %c25 = arith.constant 25 : index
    %42 = vector.load %arg4[%c0_21, %c25] : memref<16x26xf32, #tpu.memory_space<vmem>>, vector<8x1xf32>
    %cst_22 = arith.constant dense<0.000000e+00> : vector<16x128xf32>
    %43 = tpu.matmul %39, %38, %cst_22 {dimension_numbers = #tpu.dot_dimension_numbers<[1], [0], [0], [1], [0, 0, 1, 1], [], []>} : vector<16x8xf32>, vector<8x128xf32>, vector<16x128xf32> -> vector<16x128xf32>
    %44 = vector.broadcast %41 : vector<16x1xf32> to vector<16x128xf32>
    %45 = arith.addf %43, %44 : vector<16x128xf32>
    %cst_23 = arith.constant 0.000000e+00 : f32
    %46 = vector.broadcast %cst_23 : f32 to vector<16x128xf32>
    %47 = arith.maximumf %45, %46 : vector<16x128xf32>
    %cst_24 = arith.constant dense<0.000000e+00> : vector<8x128xf32>
    %48 = tpu.matmul %40, %47, %cst_24 {dimension_numbers = #tpu.dot_dimension_numbers<[1], [0], [0], [1], [0, 0, 1, 1], [], []>} : vector<8x16xf32>, vector<16x128xf32>, vector<8x128xf32> -> vector<8x128xf32>
    %49 = vector.broadcast %42 : vector<8x1xf32> to vector<8x128xf32>
    %50 = arith.addf %48, %49 : vector<8x128xf32>
    %51 = arith.addf %38, %50 : vector<8x128xf32>
    %c3 = arith.constant 3 : index
    %c0_25 = arith.constant 0 : index
    %52 = vector.load %arg3[%c3, %c0_25] : memref<8x128xf32, #tpu.memory_space<vmem>>, vector<1x128xf32>
    %c4 = arith.constant 4 : index
    %c0_26 = arith.constant 0 : index
    %53 = vector.load %arg3[%c4, %c0_26] : memref<8x128xf32, #tpu.memory_space<vmem>>, vector<1x128xf32>
    %cst_27 = arith.constant dense<0.000000e+00> : vector<8x128xf32>
    %54 = tpu.matmul %51, %22, %cst_27 {dimension_numbers = #tpu.dot_dimension_numbers<[1], [0], [0], [1], [0, 0, 1, 1], [], []>} : vector<8x128xf32>, vector<128x128xf32>, vector<8x128xf32> -> vector<8x128xf32>
    %55 = arith.mulf %51, %51 : vector<8x128xf32>
    %cst_28 = arith.constant dense<0.000000e+00> : vector<8x128xf32>
    %56 = tpu.matmul %55, %22, %cst_28 {dimension_numbers = #tpu.dot_dimension_numbers<[1], [0], [0], [1], [0, 0, 1, 1], [], []>} : vector<8x128xf32>, vector<128x128xf32>, vector<8x128xf32> -> vector<8x128xf32>
    %57 = arith.subf %51, %54 : vector<8x128xf32>
    %58 = arith.mulf %54, %54 : vector<8x128xf32>
    %59 = arith.subf %56, %58 : vector<8x128xf32>
    %cst_29 = arith.constant 9.99999974E-6 : f32
    %60 = vector.broadcast %cst_29 : f32 to vector<8x128xf32>
    %61 = arith.addf %59, %60 : vector<8x128xf32>
    %62 = math.rsqrt %61 : vector<8x128xf32>
    %63 = arith.mulf %57, %62 : vector<8x128xf32>
    %64 = vector.broadcast %52 : vector<1x128xf32> to vector<8x128xf32>
    %65 = arith.mulf %63, %64 : vector<8x128xf32>
    %66 = vector.broadcast %53 : vector<1x128xf32> to vector<8x128xf32>
    %67 = arith.addf %65, %66 : vector<8x128xf32>
    %c0_30 = arith.constant 0 : index
    %c0_31 = arith.constant 0 : index
    %68 = vector.load %arg5[%c0_30, %c0_31] : memref<129x128xf32, #tpu.memory_space<vmem>>, vector<128x128xf32>
    %cst_32 = arith.constant dense<0.000000e+00> : vector<8x128xf32>
    %69 = tpu.matmul %67, %68, %cst_32 {dimension_numbers = #tpu.dot_dimension_numbers<[1], [0], [0], [1], [0, 0, 1, 1], [], []>} : vector<8x128xf32>, vector<128x128xf32>, vector<8x128xf32> -> vector<8x128xf32>
    %c128 = arith.constant 128 : index
    %c0_33 = arith.constant 0 : index
    %70 = vector.load %arg5[%c128, %c0_33] : memref<129x128xf32, #tpu.memory_space<vmem>>, vector<1x128xf32>
    %71 = vector.broadcast %70 : vector<1x128xf32> to vector<8x128xf32>
    %72 = arith.addf %69, %71 : vector<8x128xf32>
    %73 = tpu.iota {dimensions = array<i32: 1>} : vector<8x128xi32>
    %c16_i32 = arith.constant 16 : i32
    %74 = vector.broadcast %c16_i32 : i32 to vector<8x128xi32>
    %75 = arith.cmpi slt, %73, %74 : vector<8x128xi32>
    %c16_i32_34 = arith.constant 16 : i32
    %76 = vector.broadcast %c16_i32_34 : i32 to vector<8x128xi32>
    %77 = arith.cmpi sge, %73, %76 : vector<8x128xi32>
    %c18_i32 = arith.constant 18 : i32
    %78 = vector.broadcast %c18_i32 : i32 to vector<8x128xi32>
    %79 = arith.cmpi slt, %73, %78 : vector<8x128xi32>
    %80 = arith.andi %77, %79 : vector<8x128xi1>
    %81 = vector.broadcast %14 : vector<8x1xf32> to vector<8x128xf32>
    %82 = arith.mulf %72, %81 : vector<8x128xf32>
    %83 = vector.broadcast %4 : vector<8x1xf32> to vector<8x128xf32>
    %84 = arith.addf %82, %83 : vector<8x128xf32>
    %cst_35 = arith.constant 0xFF800000 : f32
    %85 = vector.broadcast %cst_35 : f32 to vector<8x128xf32>
    %86 = arith.select %80, %72, %85 : vector<8x128xi1>, vector<8x128xf32>
    %cst_36 = arith.constant dense<0xFF800000> : vector<8xf32>
    %87 = vector.multi_reduction <maximumf>, %86, %cst_36 [1] : vector<8x128xf32> to vector<8xf32>
    %88 = vector.shape_cast %87 : vector<8xf32> to vector<8x1xf32>
    %89 = vector.broadcast %88 : vector<8x1xf32> to vector<8x128xf32>
    %90 = arith.subf %72, %89 : vector<8x128xf32>
    %91 = math.exp %90 : vector<8x128xf32>
    %cst_37 = arith.constant 0.000000e+00 : f32
    %92 = vector.broadcast %cst_37 : f32 to vector<8x128xf32>
    %93 = arith.select %80, %91, %92 : vector<8x128xi1>, vector<8x128xf32>
    %cst_38 = arith.constant dense<0.000000e+00> : vector<8xf32>
    %94 = vector.multi_reduction <add>, %93, %cst_38 [1] : vector<8x128xf32> to vector<8xf32>
    %95 = vector.shape_cast %94 : vector<8xf32> to vector<8x1xf32>
    %96 = vector.broadcast %95 : vector<8x1xf32> to vector<8x128xf32>
    %97 = arith.divf %93, %96 : vector<8x128xf32>
    %98 = arith.select %75, %84, %97 : vector<8x128xi1>, vector<8x128xf32>
    %c0_39 = arith.constant 0 : index
    %c0_40 = arith.constant 0 : index
    %99 = vector.load %arg6[%c0_39, %c0_40] : memref<8x128xf32, #tpu.memory_space<vmem>>, vector<8x128xf32>
    tpu.vector_store %arg6[%c0_39, %c0_40], %98 {strides = array<i32>} : memref<8x128xf32, #tpu.memory_space<vmem>>, vector<8x128xf32>,
    return
  }
}

</mosaic_0001>

<llo_original>
// kernel: model_forward.1
$region0: #{model_forward.1}
  #allocation0 [shape = 'u32[]', space=smem, size = 0x4, offset = 0x4, fixed_abs, tag = 'smem constant byte address 0x4 - core index']
  #allocation1 [shape = 'u32[144,128]{1,0:T(1,128)}', space=vmem, size = 0x12000, scoped, tag = 'internal scratch']
  %s0 = inlined_call_operand.vmem [shape: f32[8,32], index: 0, kind: input, shape index: {}]
  %s1 = inlined_call_operand.vmem [shape: f32[32,128], index: 1, kind: input, shape index: {}]
  %s2 = inlined_call_operand.hbm [shape: f32[128,128], index: 2, kind: input, shape index: {}]
  %s3 = inlined_call_operand.hbm [shape: f32[8,128], index: 3, kind: input, shape index: {}]
  %s4 = inlined_call_operand.vmem [shape: f32[16,26], index: 4, kind: input, shape index: {}]
  %s5 = inlined_call_operand.hbm [shape: f32[129,128], index: 5, kind: input, shape index: {}]
  %s6 = inlined_call_operand.vmem [shape: f32[8,128], index: 6, kind: output, shape index: {}]
  %s7 = sld [smem:[#allocation0]]
  $region46: #{model_forward.1} parent=0
    _
  %s9 = ssub.s32 1, %s7
  %s10 = scalar_select 0, %s9, %s7
  $region1: #{model_forward.1} parent=0
    #allocation2 [shape = 'u8[65536]{0}', space=vmem, size = 0x10000, scoped, tag = 'input window, operand 2, single buffered']
    #allocation3 [shape = 's32[1]{0}', space=sflag, size = 0x4, scoped, tag = 'scoped memory for model_forward.1']
    #allocation4 [shape = 'u8[4096]{0}', space=vmem, size = 0x1000, scoped, tag = 'input window, operand 3, single buffered']
    #allocation5 [shape = 's32[1]{0}', space=sflag, size = 0x4, scoped, tag = 'scoped memory for model_forward.1']
    #allocation6 [shape = 'u8[69632]{0}', space=vmem, size = 0x11000, scoped, tag = 'input window, operand 5, single buffered']
    %11 = vsyncpa [#allocation3], 0
    %12 = vsyncpa [#allocation5], 0
    // Predicated region
    $region2: #{model_forward.1} parent=1 // pred_check
      _
    $region3: #{model_forward.1} parent=1 // pred_check_branch
      %14 = sbr.rel (0) target = $region5
    $region4: #{model_forward.1} parent=1 // pred_region
      _
    $region5: #{model_forward.1} parent=1 // pred_fallthru
      _
    // Predicated region
    $region6: #{model_forward.1} parent=1 // pred_check
      _
    $region7: #{model_forward.1} parent=1 // pred_check_branch
      %16 = sbr.rel (0) target = $region9
    $region8: #{model_forward.1} parent=1 // pred_region
      _
    $region9: #{model_forward.1} parent=1 // pred_fallthru
      _
    // Predicated region
    $region10: #{model_forward.1} parent=1 // pred_check
      _
    $region11: #{model_forward.1} parent=1 // pred_check_branch
      %18 = sbr.rel (0) target = $region13
    $region12: #{model_forward.1} parent=1 // pred_region
      %s20 = ssub.s32 2048, 2048
      %21 = vsyncadd [#allocation3], %s20
      %s22 = sshll.u32 [#allocation2], 4
      %s23 = int_to_ptr.vmem [resolvable:$true] %s22
      %28 = dma.hbm_to_vmem [thread:$0]  %s2, 2048, %s23, [#allocation3], 128, 128, 8
    $region13: #{model_forward.1} parent=1 // pred_fallthru
      _
    // Predicated region
    $region14: #{model_forward.1} parent=1 // pred_check
      _
    $region15: #{model_forward.1} parent=1 // pred_check_branch
      %30 = sbr.rel (0) target = $region17
    $region16: #{model_forward.1} parent=1 // pred_region
      %s32 = ssub.s32 128, 128
      %33 = vsyncadd [#allocation5], %s32
      %s35 = sshll.u32 [#allocation4], 4
      %s36 = int_to_ptr.vmem [resolvable:$true] %s35
      %38 = dma.hbm_to_vmem [thread:$0]  %s3, 128, %s36, [#allocation5]
    $region17: #{model_forward.1} parent=1 // pred_fallthru
      _
    // Predicated region
    $region18: #{model_forward.1} parent=1 // pred_check
      _
    $region19: #{model_forward.1} parent=1 // pred_check_branch
      %40 = sbr.rel (0) target = $region21
    $region20: #{model_forward.1} parent=1 // pred_region
      _
    $region21: #{model_forward.1} parent=1 // pred_fallthru
      _
    // Predicated region
    $region22: #{model_forward.1} parent=1 // pred_check
      _
    $region23: #{model_forward.1} parent=1 // pred_check_branch
      %42 = sbr.rel (0) target = $region25
    $region24: #{model_forward.1} parent=1 // pred_region
      %s44 = ssub.s32 2176, 2176
      %45 = vsyncadd [#allocation5], %s44
      %s46 = sshll.u32 [#allocation6], 4
      %s47 = int_to_ptr.vmem [resolvable:$true] %s46
      %52 = dma.hbm_to_vmem [thread:$0]  %s5, 2176, %s47, [#allocation5], 128, 128, 8
    $region25: #{model_forward.1} parent=1 // pred_fallthru
      _
    // Predicated region
    $region26: #{model_forward.1} parent=1 // pred_check
      _
    $region27: #{model_forward.1} parent=1 // pred_check_branch
      %54 = sbr.rel (0) target = $region29
    $region28: #{model_forward.1} parent=1 // pred_region
      %55 = dma.done [#allocation3], 2048
    $region29: #{model_forward.1} parent=1 // pred_fallthru
      _
    // Predicated region
    $region30: #{model_forward.1} parent=1 // pred_check
      _
    $region31: #{model_forward.1} parent=1 // pred_check_branch
      %57 = sbr.rel (0) target = $region33
    $region32: #{model_forward.1} parent=1 // pred_region
      %58 = dma.done [#allocation5], 128
    $region33: #{model_forward.1} parent=1 // pred_fallthru
      _
    // Predicated region
    $region34: #{model_forward.1} parent=1 // pred_check
      _
    $region35: #{model_forward.1} parent=1 // pred_check_branch
      %60 = sbr.rel (0) target = $region37
    $region36: #{model_forward.1} parent=1 // pred_region
      %61 = dma.done [#allocation5], 2176
    $region37: #{model_forward.1} parent=1 // pred_fallthru
      _
    %v62 = vld [vmem:[%s0] sm:$0xff]
    %vm63 = vcmask 261120
    %v64 = vsel %vm63, %v62, 0.0
    %65 = vadd.xlane.f32.xlu0 %v64
    %v66 = vpop.xlane.xlu0 %65
    %v67 = vrcp.pop 32.0
    %v68 = vmul.f32 %v66, %v67
    %v69 = vsub.f32 %v62, %v68
    %v70 = vmul.f32 %v69, %v69
    %v71 = vsel %vm63, %v70, 0.0
    %72 = vadd.xlane.f32.xlu0 %v71
    %v73 = vpop.xlane.xlu0 %72
    %v74 = vmul.f32 %v73, %v67
    %v75 = vadd.f32 %v74, 1e-05
    %v76 = vrsqrt.pop %v75
    %v77 = vmul.f32 %v75, %v76
    %vm78 = vcmp.eq.f32.partialorder %v75, inf
    %v79 = vsel %vm78, %v75, %v77
    %vm80 = vcmp.eq.f32.partialorder %v75, 0.0
    %v81 = vand.u32 %v75, 2147483648
    %v82 = vsel %vm80, %v81, %v79
    %v83 = vrcp.pop %v82
    %v84 = vmul.f32 %v69, %v83
    %v85 = vld [vmem:[%s1] sm:$0xff]
    %v86 = vld [vmem:[%s1 + $0x8] sm:$0xff]
    %v87 = vld [vmem:[%s1 + $0x10] sm:$0xff]
    %v88 = vld [vmem:[%s1 + $0x18] sm:$0xff]
    %v89 = vld [vmem:[#allocation4] sm:$0x1]
    %v90 = vlaneseq
    %v91 = vshrl.u32 %v90, 7
    %v92 = vsub.s32 0, %v91
    %v93 = vrot.slane %v89, %v92
    %v95 = vsel %vm63, %v84, 0
    %97 = vmatprep.subr.mxu0 0.0
    %98 = vmatpush1.msra.mxu0 %v85
    %99 = vmatprep.subr.mxu0 0.0
    %100 = vmatpush1.msra.mxu0 %v86
    %101 = vmatprep.subr.mxu0 0.0
    %102 = vmatpush1.msra.mxu0 %v87
    %103 = vmatprep.subr.mxu0 0.0
    %104 = vmatpush1.msra.mxu0 %v88
    %105 = vmatprep.subr.mxu0 0.0
    %106 = vmatpush1.msra.mxu0 0.0
    %107 = vmatprep.subr.mxu0 0.0
    %108 = vmatpush1.msra.mxu0 0.0
    %109 = vmatprep.subr.mxu0 0.0
    %110 = vmatpush1.msra.mxu0 0.0
    %111 = vmatprep.subr.mxu0 0.0
    %112 = vmatpush1.msra.mxu0 0.0
    %113 = vmatprep.subr.mxu0 0.0
    %114 = vmatpush1.msra.mxu0 0.0
    %115 = vmatprep.subr.mxu0 0.0
    %116 = vmatpush1.msra.mxu0 0.0
    %117 = vmatprep.subr.mxu0 0.0
    %118 = vmatpush1.msra.mxu0 0.0
    %119 = vmatprep.subr.mxu0 0.0
    %120 = vmatpush1.msra.mxu0 0.0
    %121 = vmatprep.subr.mxu0 0.0
    %122 = vmatpush1.msra.mxu0 0.0
    %123 = vmatprep.subr.mxu0 0.0
    %124 = vmatpush1.msra.mxu0 0.0
    %125 = vmatprep.subr.mxu0 0.0
    %126 = vmatpush1.msra.mxu0 0.0
    %127 = vmatprep.subr.mxu0 0.0
    %128 = vmatpush1.msra.mxu0 0.0
    %129 = vmatprep.subr.mxu0 0.0
    %130 = vmatpush1.msra.mxu0 0.0
    %131 = vmatprep.subr.mxu0 0.0
    %132 = vmatpush1.msra.mxu0 0.0
    %133 = vmatprep.subr.mxu0 0.0
    %134 = vmatpush1.msra.mxu0 0.0
    %135 = vmatprep.subr.mxu0 0.0
    %136 = vmatpush1.msra.mxu0 0.0
    %137 = vmatprep.subr.mxu0 0.0
    %138 = vmatpush1.msra.mxu0 0.0
    %139 = vmatprep.subr.mxu0 0.0
    %140 = vmatpush1.msra.mxu0 0.0
    %141 = vmatprep.subr.mxu0 0.0
    %142 = vmatpush1.msra.mxu0 0.0
    %143 = vmatprep.subr.mxu0 0.0
    %144 = vmatpush1.msra.mxu0 0.0
    %145 = vmatprep.subr.mxu0 0.0
    %146 = vmatpush1.msra.mxu0 0.0
    %147 = vmatprep.subr.mxu0 0.0
    %148 = vmatpush1.msra.mxu0 0.0
    %149 = vmatprep.subr.mxu0 0.0
    %150 = vmatpush1.msra.mxu0 0.0
    %151 = vmatprep.subr.mxu0 0.0
    %152 = vmatpush1.msra.mxu0 0.0
    %153 = vmatprep.subr.mxu0 0.0
    %154 = vmatpush1.msra.mxu0 0.0
    %155 = vmatprep.subr.mxu0 0.0
    %156 = vmatpush1.msra.mxu0 0.0
    %157 = vmatprep.subr.mxu0 0.0
    %158 = vmatpush1.msra.mxu0 0.0
    %159 = vmatprep.subr.mxu0 0.0
    %160 = vmatpush1.msra.mxu0 0.0
    %161 = vmatprep.mubr.f32.mxu0 0.0
    %162 = vmatmul.mubr.f32.gmra.mrb[0].mxu0 %v95
    %v163 = vpop.f32.mrb[0].mxu0
    %v164 = vadd.f32 %v93, %v163
    %v165 = vpop.f32.mrb[0].mxu0
    %166 = vdwg.mxu0
    %v167 = vld [vmem:[#allocation2] sm:$0xff]
    %v168 = vld [vmem:[#allocation2 + $0x8] sm:$0xff]
    %v169 = vld [vmem:[#allocation2 + $0x10] sm:$0xff]
    %v170 = vld [vmem:[#allocation2 + $0x18] sm:$0xff]
    %v171 = vld [vmem:[#allocation2 + $0x20] sm:$0xff]
    %v172 = vld [vmem:[#allocation2 + $0x28] sm:$0xff]
    %v173 = vld [vmem:[#allocation2 + $0x30] sm:$0xff]
    %v174 = vld [vmem:[#allocation2 + $0x38] sm:$0xff]
    %v175 = vld [vmem:[#allocation2 + $0x40] sm:$0xff]
    %v176 = vld [vmem:[#allocation2 + $0x48] sm:$0xff]
    %v177 = vld [vmem:[#allocation2 + $0x50] sm:$0xff]
    %v178 = vld [vmem:[#allocation2 + $0x58] sm:$0xff]
    %v179 = vld [vmem:[#allocation2 + $0x60] sm:$0xff]
    %v180 = vld [vmem:[#allocation2 + $0x68] sm:$0xff]
    %v181 = vld [vmem:[#allocation2 + $0x70] sm:$0xff]
    %v182 = vld [vmem:[#allocation2 + $0x78] sm:$0xff]
    %v183 = vld [vmem:[#allocation4 + $0x1] sm:$0x1]
    %v184 = vld [vmem:[#allocation4 + $0x2] sm:$0x1]
    %185 = vmatprep.subr.mxu0 0.0
    %186 = vmatpush1.msra.mxu0 %v167
    %187 = vmatprep.subr.mxu0 0.0
    %188 = vmatpush1.msra.mxu0 %v168
    %189 = vmatprep.subr.mxu0 0.0
    %190 = vmatpush1.msra.mxu0 %v169
    %191 = vmatprep.subr.mxu0 0.0
    %192 = vmatpush1.msra.mxu0 %v170
    %193 = vmatprep.subr.mxu0 0.0
    %194 = vmatpush1.msra.mxu0 %v171
    %195 = vmatprep.subr.mxu0 0.0
    %196 = vmatpush1.msra.mxu0 %v172
    %197 = vmatprep.subr.mxu0 0.0
    %198 = vmatpush1.msra.mxu0 %v173
    %199 = vmatprep.subr.mxu0 0.0
    %200 = vmatpush1.msra.mxu0 %v174
    %201 = vmatprep.subr.mxu0 0.0
    %202 = vmatpush1.msra.mxu0 %v175
    %203 = vmatprep.subr.mxu0 0.0
    %204 = vmatpush1.msra.mxu0 %v176
    %205 = vmatprep.subr.mxu0 0.0
    %206 = vmatpush1.msra.mxu0 %v177
    %207 = vmatprep.subr.mxu0 0.0
    %208 = vmatpush1.msra.mxu0 %v178
    %209 = vmatprep.subr.mxu0 0.0
    %210 = vmatpush1.msra.mxu0 %v179
    %211 = vmatprep.subr.mxu0 0.0
    %212 = vmatpush1.msra.mxu0 %v180
    %213 = vmatprep.subr.mxu0 0.0
    %214 = vmatpush1.msra.mxu0 %v181
    %215 = vmatprep.subr.mxu0 0.0
    %216 = vmatpush1.msra.mxu0 %v182
    %217 = vmatprep.subr.mxu0 0.0
    %218 = vmatpush1.msra.mxu0 0.0
    %219 = vmatprep.subr.mxu0 0.0
    %220 = vmatpush1.msra.mxu0 0.0
    %221 = vmatprep.subr.mxu0 0.0
    %222 = vmatpush1.msra.mxu0 0.0
    %223 = vmatprep.subr.mxu0 0.0
    %224 = vmatpush1.msra.mxu0 0.0
    %225 = vmatprep.subr.mxu0 0.0
    %226 = vmatpush1.msra.mxu0 0.0
    %227 = vmatprep.subr.mxu0 0.0
    %228 = vmatpush1.msra.mxu0 0.0
    %229 = vmatprep.subr.mxu0 0.0
    %230 = vmatpush1.msra.mxu0 0.0
    %231 = vmatprep.subr.mxu0 0.0
    %232 = vmatpush1.msra.mxu0 0.0
    %233 = vmatprep.subr.mxu0 0.0
    %234 = vmatpush1.msra.mxu0 0.0
    %235 = vmatprep.subr.mxu0 0.0
    %236 = vmatpush1.msra.mxu0 0.0
    %237 = vmatprep.subr.mxu0 0.0
    %238 = vmatpush1.msra.mxu0 0.0
    %239 = vmatprep.subr.mxu0 0.0
    %240 = vmatpush1.msra.mxu0 0.0
    %241 = vmatprep.subr.mxu0 0.0
    %242 = vmatpush1.msra.mxu0 0.0
    %243 = vmatprep.subr.mxu0 0.0
    %244 = vmatpush1.msra.mxu0 0.0
    %245 = vmatprep.subr.mxu0 0.0
    %246 = vmatpush1.msra.mxu0 0.0
    %247 = vmatprep.subr.mxu0 0.0
    %248 = vmatpush1.msra.mxu0 0.0
    %249 = vmatprep.mubr.f32.mxu0 0.0
    %250 = vmatmul.mubr.f32.gmra.mrb[0].mxu0 %v164
    %v251 = vpop.f32.mrb[0].mxu0
    %v252 = vadd.f32 0.0, %v251
    %v253 = vpop.f32.mrb[0].mxu0
    %254 = vdwg.mxu0
    %v255 = vmul.f32 %v164, %v164
    %256 = vmatprep.subr.mxu0 0.0
    %257 = vmatpush1.msra.mxu0 %v167
    %258 = vmatprep.subr.mxu0 0.0
    %259 = vmatpush1.msra.mxu0 %v168
    %260 = vmatprep.subr.mxu0 0.0
    %261 = vmatpush1.msra.mxu0 %v169
    %262 = vmatprep.subr.mxu0 0.0
    %263 = vmatpush1.msra.mxu0 %v170
    %264 = vmatprep.subr.mxu0 0.0
    %265 = vmatpush1.msra.mxu0 %v171
    %266 = vmatprep.subr.mxu0 0.0
    %267 = vmatpush1.msra.mxu0 %v172
    %268 = vmatprep.subr.mxu0 0.0
    %269 = vmatpush1.msra.mxu0 %v173
    %270 = vmatprep.subr.mxu0 0.0
    %271 = vmatpush1.msra.mxu0 %v174
    %272 = vmatprep.subr.mxu0 0.0
    %273 = vmatpush1.msra.mxu0 %v175
    %274 = vmatprep.subr.mxu0 0.0
    %275 = vmatpush1.msra.mxu0 %v176
    %276 = vmatprep.subr.mxu0 0.0
    %277 = vmatpush1.msra.mxu0 %v177
    %278 = vmatprep.subr.mxu0 0.0
    %279 = vmatpush1.msra.mxu0 %v178
    %280 = vmatprep.subr.mxu0 0.0
    %281 = vmatpush1.msra.mxu0 %v179
    %282 = vmatprep.subr.mxu0 0.0
    %283 = vmatpush1.msra.mxu0 %v180
    %284 = vmatprep.subr.mxu0 0.0
    %285 = vmatpush1.msra.mxu0 %v181
    %286 = vmatprep.subr.mxu0 0.0
    %287 = vmatpush1.msra.mxu0 %v182
    %288 = vmatprep.subr.mxu0 0.0
    %289 = vmatpush1.msra.mxu0 0.0
    %290 = vmatprep.subr.mxu0 0.0
    %291 = vmatpush1.msra.mxu0 0.0
    %292 = vmatprep.subr.mxu0 0.0
    %293 = vmatpush1.msra.mxu0 0.0
    %294 = vmatprep.subr.mxu0 0.0
    %295 = vmatpush1.msra.mxu0 0.0
    %296 = vmatprep.subr.mxu0 0.0
    %297 = vmatpush1.msra.mxu0 0.0
    %298 = vmatprep.subr.mxu0 0.0
    %299 = vmatpush1.msra.mxu0 0.0
    %300 = vmatprep.subr.mxu0 0.0
    %301 = vmatpush1.msra.mxu0 0.0
    %302 = vmatprep.subr.mxu0 0.0
    %303 = vmatpush1.msra.mxu0 0.0
    %304 = vmatprep.subr.mxu0 0.0
    %305 = vmatpush1.msra.mxu0 0.0
    %306 = vmatprep.subr.mxu0 0.0
    %307 = vmatpush1.msra.mxu0 0.0
    %308 = vmatprep.subr.mxu0 0.0
    %309 = vmatpush1.msra.mxu0 0.0
    %310 = vmatprep.subr.mxu0 0.0
    %311 = vmatpush1.msra.mxu0 0.0
    %312 = vmatprep.subr.mxu0 0.0
    %313 = vmatpush1.msra.mxu0 0.0
    %314 = vmatprep.subr.mxu0 0.0
    %315 = vmatpush1.msra.mxu0 0.0
    %316 = vmatprep.subr.mxu0 0.0
    %317 = vmatpush1.msra.mxu0 0.0
    %318 = vmatprep.subr.mxu0 0.0
    %319 = vmatpush1.msra.mxu0 0.0
    %320 = vmatprep.mubr.f32.mxu0 0.0
    %321 = vmatmul.mubr.f32.gmra.mrb[0].mxu0 %v255
    %v322 = vpop.f32.mrb[0].mxu0
    %v323 = vadd.f32 0.0, %v322
    %v324 = vpop.f32.mrb[0].mxu0
    %325 = vdwg.mxu0
    %v326 = vsub.f32 %v164, %v252
    %v327 = vmul.f32 %v252, %v252
    %v328 = vsub.f32 %v323, %v327
    %v329 = vadd.f32 %v328, 1e-05
    %v330 = vrsqrt.pop %v329
    %v331 = vmul.f32 %v326, %v330
    %v332 = vlaneseq
    %v333 = vshrl.u32 %v332, 7
    %v334 = vsub.s32 0, %v333
    %v335 = vrot.slane %v183, %v334
    %v336 = vmul.f32 %v331, %v335
    %v337 = vlaneseq
    %v338 = vshrl.u32 %v337, 7
    %v339 = vsub.s32 0, %v338
    %v340 = vrot.slane %v184, %v339
    %v341 = vadd.f32 %v336, %v340
    %v342 = vld [vmem:[%s4] sm:$0xff]
    %v343 = vld [vmem:[%s4 + $0x8] sm:$0xff]
    %345 = vset.pattern.permute.xlu0 24
    %346 = vperm.xlu0 %345, %v342
    %v347 = vpop.permute.xlu0 %346
    %350 = vset.pattern.permute.xlu0 24
    %351 = vperm.xlu0 %350, %v343
    %v352 = vpop.permute.xlu0 %351
    %vm354 = vcmask 64512
    %v355 = vsel %vm354, %v342, 0
    %v357 = vsel %vm354, %v343, 0
    %359 = vmatprep.subr.mxu0 0.0
    %360 = vmatpush1.msra.mxu0 %v341
    %361 = vmatprep.subr.mxu0 0.0
    %362 = vmatpush1.msra.mxu0 0.0
    %363 = vmatprep.subr.mxu0 0.0
    %364 = vmatpush1.msra.mxu0 0.0
    %365 = vmatprep.subr.mxu0 0.0
    %366 = vmatpush1.msra.mxu0 0.0
    %367 = vmatprep.subr.mxu0 0.0
    %368 = vmatpush1.msra.mxu0 0.0
    %369 = vmatprep.subr.mxu0 0.0
    %370 = vmatpush1.msra.mxu0 0.0
    %371 = vmatprep.subr.mxu0 0.0
    %372 = vmatpush1.msra.mxu0 0.0
    %373 = vmatprep.subr.mxu0 0.0
    %374 = vmatpush1.msra.mxu0 0.0
    %375 = vmatprep.subr.mxu0 0.0
    %376 = vmatpush1.msra.mxu0 0.0
    %377 = vmatprep.subr.mxu0 0.0
    %378 = vmatpush1.msra.mxu0 0.0
    %379 = vmatprep.subr.mxu0 0.0
    %380 = vmatpush1.msra.mxu0 0.0
    %381 = vmatprep.subr.mxu0 0.0
    %382 = vmatpush1.msra.mxu0 0.0
    %383 = vmatprep.subr.mxu0 0.0
    %384 = vmatpush1.msra.mxu0 0.0
    %385 = vmatprep.subr.mxu0 0.0
    %386 = vmatpush1.msra.mxu0 0.0
    %387 = vmatprep.subr.mxu0 0.0
    %388 = vmatpush1.msra.mxu0 0.0
    %389 = vmatprep.subr.mxu0 0.0
    %390 = vmatpush1.msra.mxu0 0.0
    %391 = vmatprep.subr.mxu0 0.0
    %392 = vmatpush1.msra.mxu0 0.0
    %393 = vmatprep.subr.mxu0 0.0
    %394 = vmatpush1.msra.mxu0 0.0
    %395 = vmatprep.subr.mxu0 0.0
    %396 = vmatpush1.msra.mxu0 0.0
    %397 = vmatprep.subr.mxu0 0.0
    %398 = vmatpush1.msra.mxu0 0.0
    %399 = vmatprep.subr.mxu0 0.0
    %400 = vmatpush1.msra.mxu0 0.0
    %401 = vmatprep.subr.mxu0 0.0
    %402 = vmatpush1.msra.mxu0 0.0
    %403 = vmatprep.subr.mxu0 0.0
    %404 = vmatpush1.msra.mxu0 0.0
    %405 = vmatprep.subr.mxu0 0.0
    %406 = vmatpush1.msra.mxu0 0.0
    %407 = vmatprep.subr.mxu0 0.0
    %408 = vmatpush1.msra.mxu0 0.0
    %409 = vmatprep.subr.mxu0 0.0
    %410 = vmatpush1.msra.mxu0 0.0
    %411 = vmatprep.subr.mxu0 0.0
    %412 = vmatpush1.msra.mxu0 0.0
    %413 = vmatprep.subr.mxu0 0.0
    %414 = vmatpush1.msra.mxu0 0.0
    %415 = vmatprep.subr.mxu0 0.0
    %416 = vmatpush1.msra.mxu0 0.0
    %417 = vmatprep.subr.mxu0 0.0
    %418 = vmatpush1.msra.mxu0 0.0
    %419 = vmatprep.subr.mxu0 0.0
    %420 = vmatpush1.msra.mxu0 0.0
    %421 = vmatprep.subr.mxu0 0.0
    %422 = vmatpush1.msra.mxu0 0.0
    %423 = vmatprep.mubr.f32.mxu0 0.0
    %424 = vmatmul.mubr.f32.gmra.mrb[0].mxu0 %v355
    %v425 = vpop.f32.mrb[0].mxu0
    %v426 = vadd.f32 %v347, %v425
    %v427 = vpop.f32.mrb[0].mxu0
    %428 = vmatprep.mubr.f32.mxu0 0.0
    %429 = vmatmul.mubr.f32.gmra.mrb[0].mxu0 %v357
    %v430 = vpop.f32.mrb[0].mxu0
    %v431 = vadd.f32 %v352, %v430
    %v432 = vpop.f32.mrb[0].mxu0
    %433 = vdwg.mxu0
    %v434 = vmax.f32 %v426, 0.0
    %v435 = vmax.f32 %v431, 0.0
    %436 = vset.pattern.permute.xlu0 25
    %437 = vperm.xlu0 %436, %v342
    %v438 = vpop.permute.xlu0 %437
    %440 = vrot.lane.b32.xlu0 %v342, 120
    %v441 = vpop.permute.xlu0 %440
    %vm442 = vcmask 130048
    %v443 = vsel %vm442, %v441, 0
    %445 = vmatprep.subr.mxu0 0.0
    %446 = vmatpush1.msra.mxu0 %v434
    %447 = vmatprep.subr.mxu0 0.0
    %448 = vmatpush1.msra.mxu0 %v435
    %449 = vmatprep.subr.mxu0 0.0
    %450 = vmatpush1.msra.mxu0 0.0
    %451 = vmatprep.subr.mxu0 0.0
    %452 = vmatpush1.msra.mxu0 0.0
    %453 = vmatprep.subr.mxu0 0.0
    %454 = vmatpush1.msra.mxu0 0.0
    %455 = vmatprep.subr.mxu0 0.0
    %456 = vmatpush1.msra.mxu0 0.0
    %457 = vmatprep.subr.mxu0 0.0
    %458 = vmatpush1.msra.mxu0 0.0
    %459 = vmatprep.subr.mxu0 0.0
    %460 = vmatpush1.msra.mxu0 0.0
    %461 = vmatprep.subr.mxu0 0.0
    %462 = vmatpush1.msra.mxu0 0.0
    %463 = vmatprep.subr.mxu0 0.0
    %464 = vmatpush1.msra.mxu0 0.0
    %465 = vmatprep.subr.mxu0 0.0
    %466 = vmatpush1.msra.mxu0 0.0
    %467 = vmatprep.subr.mxu0 0.0
    %468 = vmatpush1.msra.mxu0 0.0
    %469 = vmatprep.subr.mxu0 0.0
    %470 = vmatpush1.msra.mxu0 0.0
    %471 = vmatprep.subr.mxu0 0.0
    %472 = vmatpush1.msra.mxu0 0.0
    %473 = vmatprep.subr.mxu0 0.0
    %474 = vmatpush1.msra.mxu0 0.0
    %475 = vmatprep.subr.mxu0 0.0
    %476 = vmatpush1.msra.mxu0 0.0
    %477 = vmatprep.subr.mxu0 0.0
    %478 = vmatpush1.msra.mxu0 0.0
    %479 = vmatprep.subr.mxu0 0.0
    %480 = vmatpush1.msra.mxu0 0.0
    %481 = vmatprep.subr.mxu0 0.0
    %482 = vmatpush1.msra.mxu0 0.0
    %483 = vmatprep.subr.mxu0 0.0
    %484 = vmatpush1.msra.mxu0 0.0
    %485 = vmatprep.subr.mxu0 0.0
    %486 = vmatpush1.msra.mxu0 0.0
    %487 = vmatprep.subr.mxu0 0.0
    %488 = vmatpush1.msra.mxu0 0.0
    %489 = vmatprep.subr.mxu0 0.0
    %490 = vmatpush1.msra.mxu0 0.0
    %491 = vmatprep.subr.mxu0 0.0
    %492 = vmatpush1.msra.mxu0 0.0
    %493 = vmatprep.subr.mxu0 0.0
    %494 = vmatpush1.msra.mxu0 0.0
    %495 = vmatprep.subr.mxu0 0.0
    %496 = vmatpush1.msra.mxu0 0.0
    %497 = vmatprep.subr.mxu0 0.0
    %498 = vmatpush1.msra.mxu0 0.0
    %499 = vmatprep.subr.mxu0 0.0
    %500 = vmatpush1.msra.mxu0 0.0
    %501 = vmatprep.subr.mxu0 0.0
    %502 = vmatpush1.msra.mxu0 0.0
    %503 = vmatprep.subr.mxu0 0.0
    %504 = vmatpush1.msra.mxu0 0.0
    %505 = vmatprep.subr.mxu0 0.0
    %506 = vmatpush1.msra.mxu0 0.0
    %507 = vmatprep.subr.mxu0 0.0
    %508 = vmatpush1.msra.mxu0 0.0
    %509 = vmatprep.mubr.f32.mxu0 0.0
    %510 = vmatmul.mubr.f32.gmra.mrb[0].mxu0 %v443
    %v511 = vpop.f32.mrb[0].mxu0
    %v512 = vadd.f32 %v438, %v511
    %v513 = vpop.f32.mrb[0].mxu0
    %514 = vdwg.mxu0
    %v515 = vadd.f32 %v341, %v512
    %v516 = vld [vmem:[#allocation4 + $0x3] sm:$0x1]
    %v517 = vld [vmem:[#allocation4 + $0x4] sm:$0x1]
    %518 = vmatprep.subr.mxu0 0.0
    %519 = vmatpush1.msra.mxu0 %v167
    %520 = vmatprep.subr.mxu0 0.0
    %521 = vmatpush1.msra.mxu0 %v168
    %522 = vmatprep.subr.mxu0 0.0
    %523 = vmatpush1.msra.mxu0 %v169
    %524 = vmatprep.subr.mxu0 0.0
    %525 = vmatpush1.msra.mxu0 %v170
    %526 = vmatprep.subr.mxu0 0.0
    %527 = vmatpush1.msra.mxu0 %v171
    %528 = vmatprep.subr.mxu0 0.0
    %529 = vmatpush1.msra.mxu0 %v172
    %530 = vmatprep.subr.mxu0 0.0
    %531 = vmatpush1.msra.mxu0 %v173
    %532 = vmatprep.subr.mxu0 0.0
    %533 = vmatpush1.msra.mxu0 %v174
    %534 = vmatprep.subr.mxu0 0.0
    %535 = vmatpush1.msra.mxu0 %v175
    %536 = vmatprep.subr.mxu0 0.0
    %537 = vmatpush1.msra.mxu0 %v176
    %538 = vmatprep.subr.mxu0 0.0
    %539 = vmatpush1.msra.mxu0 %v177
    %540 = vmatprep.subr.mxu0 0.0
    %541 = vmatpush1.msra.mxu0 %v178
    %542 = vmatprep.subr.mxu0 0.0
    %543 = vmatpush1.msra.mxu0 %v179
    %544 = vmatprep.subr.mxu0 0.0
    %545 = vmatpush1.msra.mxu0 %v180
    %546 = vmatprep.subr.mxu0 0.0
    %547 = vmatpush1.msra.mxu0 %v181
    %548 = vmatprep.subr.mxu0 0.0
    %549 = vmatpush1.msra.mxu0 %v182
    %550 = vmatprep.subr.mxu0 0.0
    %551 = vmatpush1.msra.mxu0 0.0
    %552 = vmatprep.subr.mxu0 0.0
    %553 = vmatpush1.msra.mxu0 0.0
    %554 = vmatprep.subr.mxu0 0.0
    %555 = vmatpush1.msra.mxu0 0.0
    %556 = vmatprep.subr.mxu0 0.0
    %557 = vmatpush1.msra.mxu0 0.0
    %558 = vmatprep.subr.mxu0 0.0
    %559 = vmatpush1.msra.mxu0 0.0
    %560 = vmatprep.subr.mxu0 0.0
    %561 = vmatpush1.msra.mxu0 0.0
    %562 = vmatprep.subr.mxu0 0.0
    %563 = vmatpush1.msra.mxu0 0.0
    %564 = vmatprep.subr.mxu0 0.0
    %565 = vmatpush1.msra.mxu0 0.0
    %566 = vmatprep.subr.mxu0 0.0
    %567 = vmatpush1.msra.mxu0 0.0
    %568 = vmatprep.subr.mxu0 0.0
    %569 = vmatpush1.msra.mxu0 0.0
    %570 = vmatprep.subr.mxu0 0.0
    %571 = vmatpush1.msra.mxu0 0.0
    %572 = vmatprep.subr.mxu0 0.0
    %573 = vmatpush1.msra.mxu0 0.0
    %574 = vmatprep.subr.mxu0 0.0
    %575 = vmatpush1.msra.mxu0 0.0
    %576 = vmatprep.subr.mxu0 0.0
    %577 = vmatpush1.msra.mxu0 0.0
    %578 = vmatprep.subr.mxu0 0.0
    %579 = vmatpush1.msra.mxu0 0.0
    %580 = vmatprep.subr.mxu0 0.0
    %581 = vmatpush1.msra.mxu0 0.0
    %582 = vmatprep.mubr.f32.mxu0 0.0
    %583 = vmatmul.mubr.f32.gmra.mrb[0].mxu0 %v515
    %v584 = vpop.f32.mrb[0].mxu0
    %v585 = vadd.f32 0.0, %v584
    %v586 = vpop.f32.mrb[0].mxu0
    %587 = vdwg.mxu0
    %v588 = vmul.f32 %v515, %v515
    %589 = vmatprep.subr.mxu0 0.0
    %590 = vmatpush1.msra.mxu0 %v167
    %591 = vmatprep.subr.mxu0 0.0
    %592 = vmatpush1.msra.mxu0 %v168
    %593 = vmatprep.subr.mxu0 0.0
    %594 = vmatpush1.msra.mxu0 %v169
    %595 = vmatprep.subr.mxu0 0.0
    %596 = vmatpush1.msra.mxu0 %v170
    %597 = vmatprep.subr.mxu0 0.0
    %598 = vmatpush1.msra.mxu0 %v171
    %599 = vmatprep.subr.mxu0 0.0
    %600 = vmatpush1.msra.mxu0 %v172
    %601 = vmatprep.subr.mxu0 0.0
    %602 = vmatpush1.msra.mxu0 %v173
    %603 = vmatprep.subr.mxu0 0.0
    %604 = vmatpush1.msra.mxu0 %v174
    %605 = vmatprep.subr.mxu0 0.0
    %606 = vmatpush1.msra.mxu0 %v175
    %607 = vmatprep.subr.mxu0 0.0
    %608 = vmatpush1.msra.mxu0 %v176
    %609 = vmatprep.subr.mxu0 0.0
    %610 = vmatpush1.msra.mxu0 %v177
    %611 = vmatprep.subr.mxu0 0.0
    %612 = vmatpush1.msra.mxu0 %v178
    %613 = vmatprep.subr.mxu0 0.0
    %614 = vmatpush1.msra.mxu0 %v179
    %615 = vmatprep.subr.mxu0 0.0
    %616 = vmatpush1.msra.mxu0 %v180
    %617 = vmatprep.subr.mxu0 0.0
    %618 = vmatpush1.msra.mxu0 %v181
    %619 = vmatprep.subr.mxu0 0.0
    %620 = vmatpush1.msra.mxu0 %v182
    %621 = vmatprep.subr.mxu0 0.0
    %622 = vmatpush1.msra.mxu0 0.0
    %623 = vmatprep.subr.mxu0 0.0
    %624 = vmatpush1.msra.mxu0 0.0
    %625 = vmatprep.subr.mxu0 0.0
    %626 = vmatpush1.msra.mxu0 0.0
    %627 = vmatprep.subr.mxu0 0.0
    %628 = vmatpush1.msra.mxu0 0.0
    %629 = vmatprep.subr.mxu0 0.0
    %630 = vmatpush1.msra.mxu0 0.0
    %631 = vmatprep.subr.mxu0 0.0
    %632 = vmatpush1.msra.mxu0 0.0
    %633 = vmatprep.subr.mxu0 0.0
    %634 = vmatpush1.msra.mxu0 0.0
    %635 = vmatprep.subr.mxu0 0.0
    %636 = vmatpush1.msra.mxu0 0.0
    %637 = vmatprep.subr.mxu0 0.0
    %638 = vmatpush1.msra.mxu0 0.0
    %639 = vmatprep.subr.mxu0 0.0
    %640 = vmatpush1.msra.mxu0 0.0
    %641 = vmatprep.subr.mxu0 0.0
    %642 = vmatpush1.msra.mxu0 0.0
    %643 = vmatprep.subr.mxu0 0.0
    %644 = vmatpush1.msra.mxu0 0.0
    %645 = vmatprep.subr.mxu0 0.0
    %646 = vmatpush1.msra.mxu0 0.0
    %647 = vmatprep.subr.mxu0 0.0
    %648 = vmatpush1.msra.mxu0 0.0
    %649 = vmatprep.subr.mxu0 0.0
    %650 = vmatpush1.msra.mxu0 0.0
    %651 = vmatprep.subr.mxu0 0.0
    %652 = vmatpush1.msra.mxu0 0.0
    %653 = vmatprep.mubr.f32.mxu0 0.0
    %654 = vmatmul.mubr.f32.gmra.mrb[0].mxu0 %v588
    %v655 = vpop.f32.mrb[0].mxu0
    %v656 = vadd.f32 0.0, %v655
    %v657 = vpop.f32.mrb[0].mxu0
    %658 = vdwg.mxu0
    %v659 = vsub.f32 %v515, %v585
    %v660 = vmul.f32 %v585, %v585
    %v661 = vsub.f32 %v656, %v660
    %v662 = vadd.f32 %v661, 1e-05
    %v663 = vrsqrt.pop %v662
    %v664 = vmul.f32 %v659, %v663
    %v665 = vlaneseq
    %v666 = vshrl.u32 %v665, 7
    %v667 = vsub.s32 0, %v666
    %v668 = vrot.slane %v516, %v667
    %v669 = vmul.f32 %v664, %v668
    %v670 = vlaneseq
    %v671 = vshrl.u32 %v670, 7
    %v672 = vsub.s32 0, %v671
    %v673 = vrot.slane %v517, %v672
    %v674 = vadd.f32 %v669, %v673
    %v675 = vld [vmem:[#allocation6] sm:$0xff]
    %v676 = vld [vmem:[#allocation6 + $0x8] sm:$0xff]
    %v677 = vld [vmem:[#allocation6 + $0x10] sm:$0xff]
    %v678 = vld [vmem:[#allocation6 + $0x18] sm:$0xff]
    %v679 = vld [vmem:[#allocation6 + $0x20] sm:$0xff]
    %v680 = vld [vmem:[#allocation6 + $0x28] sm:$0xff]
    %v681 = vld [vmem:[#allocation6 + $0x30] sm:$0xff]
    %v682 = vld [vmem:[#allocation6 + $0x38] sm:$0xff]
    %v683 = vld [vmem:[#allocation6 + $0x40] sm:$0xff]
    %v684 = vld [vmem:[#allocation6 + $0x48] sm:$0xff]
    %v685 = vld [vmem:[#allocation6 + $0x50] sm:$0xff]
    %v686 = vld [vmem:[#allocation6 + $0x58] sm:$0xff]
    %v687 = vld [vmem:[#allocation6 + $0x60] sm:$0xff]
    %v688 = vld [vmem:[#allocation6 + $0x68] sm:$0xff]
    %v689 = vld [vmem:[#allocation6 + $0x70] sm:$0xff]
    %v690 = vld [vmem:[#allocation6 + $0x78] sm:$0xff]
    %v691 = vld [vmem:[#allocation6 + $0x80] sm:$0x1]
    %v692 = vlaneseq
    %v693 = vshrl.u32 %v692, 7
    %v694 = vsub.s32 0, %v693
    %v695 = vrot.slane %v691, %v694
    %696 = vmatprep.subr.mxu0 0.0
    %697 = vmatpush1.msra.mxu0 %v675
    %698 = vmatprep.subr.mxu0 0.0
    %699 = vmatpush1.msra.mxu0 %v676
    %700 = vmatprep.subr.mxu0 0.0
    %701 = vmatpush1.msra.mxu0 %v677
    %702 = vmatprep.subr.mxu0 0.0
    %703 = vmatpush1.msra.mxu0 %v678
    %704 = vmatprep.subr.mxu0 0.0
    %705 = vmatpush1.msra.mxu0 %v679
    %706 = vmatprep.subr.mxu0 0.0
    %707 = vmatpush1.msra.mxu0 %v680
    %708 = vmatprep.subr.mxu0 0.0
    %709 = vmatpush1.msra.mxu0 %v681
    %710 = vmatprep.subr.mxu0 0.0
    %711 = vmatpush1.msra.mxu0 %v682
    %712 = vmatprep.subr.mxu0 0.0
    %713 = vmatpush1.msra.mxu0 %v683
    %714 = vmatprep.subr.mxu0 0.0
    %715 = vmatpush1.msra.mxu0 %v684
    %716 = vmatprep.subr.mxu0 0.0
    %717 = vmatpush1.msra.mxu0 %v685
    %718 = vmatprep.subr.mxu0 0.0
    %719 = vmatpush1.msra.mxu0 %v686
    %720 = vmatprep.subr.mxu0 0.0
    %721 = vmatpush1.msra.mxu0 %v687
    %722 = vmatprep.subr.mxu0 0.0
    %723 = vmatpush1.msra.mxu0 %v688
    %724 = vmatprep.subr.mxu0 0.0
    %725 = vmatpush1.msra.mxu0 %v689
    %726 = vmatprep.subr.mxu0 0.0
    %727 = vmatpush1.msra.mxu0 %v690
    %728 = vmatprep.subr.mxu0 0.0
    %729 = vmatpush1.msra.mxu0 0.0
    %730 = vmatprep.subr.mxu0 0.0
    %731 = vmatpush1.msra.mxu0 0.0
    %732 = vmatprep.subr.mxu0 0.0
    %733 = vmatpush1.msra.mxu0 0.0
    %734 = vmatprep.subr.mxu0 0.0
    %735 = vmatpush1.msra.mxu0 0.0
    %736 = vmatprep.subr.mxu0 0.0
    %737 = vmatpush1.msra.mxu0 0.0
    %738 = vmatprep.subr.mxu0 0.0
    %739 = vmatpush1.msra.mxu0 0.0
    %740 = vmatprep.subr.mxu0 0.0
    %741 = vmatpush1.msra.mxu0 0.0
    %742 = vmatprep.subr.mxu0 0.0
    %743 = vmatpush1.msra.mxu0 0.0
    %744 = vmatprep.subr.mxu0 0.0
    %745 = vmatpush1.msra.mxu0 0.0
    %746 = vmatprep.subr.mxu0 0.0
    %747 = vmatpush1.msra.mxu0 0.0
    %748 = vmatprep.subr.mxu0 0.0
    %749 = vmatpush1.msra.mxu0 0.0
    %750 = vmatprep.subr.mxu0 0.0
    %751 = vmatpush1.msra.mxu0 0.0
    %752 = vmatprep.subr.mxu0 0.0
    %753 = vmatpush1.msra.mxu0 0.0
    %754 = vmatprep.subr.mxu0 0.0
    %755 = vmatpush1.msra.mxu0 0.0
    %756 = vmatprep.subr.mxu0 0.0
    %757 = vmatpush1.msra.mxu0 0.0
    %758 = vmatprep.subr.mxu0 0.0
    %759 = vmatpush1.msra.mxu0 0.0
    %760 = vmatprep.mubr.f32.mxu0 0.0
    %761 = vmatmul.mubr.f32.gmra.mrb[0].mxu0 %v674
    %v762 = vpop.f32.mrb[0].mxu0
    %v763 = vadd.f32 %v695, %v762
    %v764 = vpop.f32.mrb[0].mxu0
    %765 = vdwg.mxu0
    %v766 = vlaneseq
    %v767 = vand.u32 %v766, 127
    %vm768 = vcmp.lt.s32.totalorder %v767, 16
    %vm769 = vcmp.ge.s32.totalorder %v767, 16
    %vm770 = vcmp.lt.s32.totalorder %v767, 18
    %vm771 = vmand %vm769, %vm770
    %v772 = vmul.f32 %v763, %v82
    %v773 = vadd.f32 %v772, %v68
    %v774 = vsel %vm771, %v763, -inf
    %775 = vmax.xlane.f32.xlu0 %v774
    %v776 = vpop.xlane.xlu0 %775
    %v777 = vsub.f32 %v763, %v776
    %v778 = vmul.f32 %v777, 1.442695
    %v779 = vpow.pop %v778
    %v780 = vsel %vm771, %v779, 0.0
    %781 = vadd.xlane.f32.xlu0 %v780
    %v782 = vpop.xlane.xlu0 %781
    %v783 = vrcp.pop %v782
    %v784 = vmul.f32 %v780, %v783
    %v785 = vsel %vm768, %v773, %v784
    %786 = vst [vmem:[%s6] sm:$0xff] %v785
    // Predicated region
    $region38: #{model_forward.1} parent=1 // pred_check
      _
    $region39: #{model_forward.1} parent=1 // pred_check_branch
      %788 = sbr.rel (0) target = $region41
    $region40: #{model_forward.1} parent=1 // pred_region
      _
    $region41: #{model_forward.1} parent=1 // pred_fallthru
      _
    // Predicated region
    $region42: #{model_forward.1} parent=1 // pred_check
      _
    $region43: #{model_forward.1} parent=1 // pred_check_branch
      %790 = sbr.rel (0) target = $region45
    $region44: #{model_forward.1} parent=1 // pred_region
      _
    $region45: #{model_forward.1} parent=1 // pred_fallthru
      _
    %791 = vsyncpa [#allocation3], 1
    %792 = vsyncpa [#allocation5], 1

</llo_original>
